<compile_context>
chip_gen: v7x
topology: tpu7x:2x2x1
jax: 0.10.0
libtpu: 0.0.40
codegen_flags: <defaults>
</compile_context>

<pallas_src>
import jax
import jax.numpy as jnp
from jax.experimental import pallas as pl
from jax.experimental.pallas import tpu as pltpu

BN_EPS = 1e-5
_HIGHEST = jax.lax.Precision.HIGHEST


def _round_up(x, m):
    return -(-x // m) * m


# ----------------------------------------------------------------------------
# Kernel
# ----------------------------------------------------------------------------
def shopee_head_kernel(
    hs_ref,      # (Bt, Lt, Hb) bf16  mask-weighted sum of last-4 BERT states
    pooled_ref,  # (Bt, C)      bf16  spatially pooled CNN features
    den_ref,     # (Bt, 1)      f32   attention-mask token counts (>= 1)
    a_img_ref,   # (C, ch)      bf16  folded (global+local)->concat weights
    a_bert_ref,  # (Hb, ch)     bf16  folded bert->concat weights
    bias_ref,    # (1, ch)      f32   folded total bias
    out_ref,     # (Bt, ch)     f32   concat_feat
    acc_bert,    # (Bt, Hb)     f32   scratch: running masked sum over L
):
    li = pl.program_id(1)

    @pl.when(li == 0)
    def _init():
        acc_bert[...] = jnp.zeros_like(acc_bert)

    # Streaming masked sequence reduction for this L tile.  The mask multiply
    # and the 4-state sum were fused into the wrapper's bf16 cast, so here we
    # only upcast (v5e has no bf16 VPU path), reduce over the sublane (L)
    # axis and accumulate in f32 VMEM scratch.
    acc_bert[...] += jnp.sum(hs_ref[...].astype(jnp.float32), axis=1)

    # ---- finalize: masked mean + the two folded bf16 MXU matmuls ------------
    @pl.when(li == pl.num_programs(1) - 1)
    def _finalize():
        # bert_feat = (mean of 4 states, mask-weighted mean over L)
        bert = (acc_bert[...] * (0.25 / den_ref[...])).astype(jnp.bfloat16)
        out = (
            jnp.dot(pooled_ref[...], a_img_ref[...],
                    preferred_element_type=jnp.float32)
            + jnp.dot(bert, a_bert_ref[...],
                      preferred_element_type=jnp.float32)
            + bias_ref[...]
        )
        out_ref[...] = out.astype(out_ref.dtype)


# ----------------------------------------------------------------------------
# Host-side parameters
# ----------------------------------------------------------------------------
def init_params(key, n_feat_cnn, n_feat_bert, channel_size):
    """Parameters matching ShopeeImgTextNet5._init_params (eval mode).

    Linear weights are stored (in_features, out_features) (transpose of the
    torch layout); BN running stats are the freshly-initialized mean=0/var=1.
    When loading a trained checkpoint, transpose the torch weights and use the
    real running stats before calling fold_params.
    """
    def xavier(k, fan_in, fan_out):
        std = (2.0 / (fan_in + fan_out)) ** 0.5
        return (std * jax.random.normal(k, (fan_in, fan_out))).astype(jnp.float32)

    def bn(ch):  # (gamma, beta, running_mean, running_var)
        return (jnp.ones((1, ch), jnp.float32), jnp.zeros((1, ch), jnp.float32),
                jnp.zeros((1, ch), jnp.float32), jnp.ones((1, ch), jnp.float32))

    ks = jax.random.split(key, 4)
    ch = channel_size
    zeros_b = jnp.zeros((1, ch), jnp.float32)
    return {
        "global": (xavier(ks[0], n_feat_cnn, ch), zeros_b) + bn(ch),
        "local":  (xavier(ks[1], n_feat_cnn, ch), zeros_b) + bn(ch),
        "bert":   (xavier(ks[2], n_feat_bert, ch), zeros_b) + bn(ch),
        "concat": (xavier(ks[3], 3 * ch, ch), zeros_b) + bn(ch),
    }


def fold_params(params):
    """Fold eval-mode BN into the Linears and collapse the affine chain.

    Returns A_img (C_cnn, ch) bf16, A_bert (Hb, ch) bf16, bias (1, ch) f32
    such that
        concat_feat = pooled @ A_img + bert_pooled @ A_bert + bias
    is exactly the original global/local/bert/concat head composition
    (bf16 weight storage is the only quantization).
    """
    def fold_linear_bn(W, b, gamma, beta, mean, var):
        s = gamma / jnp.sqrt(var + BN_EPS)            # (1, ch)
        return W * s, (b - mean) * s + beta           # (in, ch), (1, ch)

    def dot_h(a, b):
        return jnp.dot(a, b, precision=_HIGHEST)

    Wg, bg = fold_linear_bn(*params["global"])
    Wl, bl = fold_linear_bn(*params["local"])
    Wb, bb = fold_linear_bn(*params["bert"])
    Wc, bc = fold_linear_bn(*params["concat"])        # Wc: (3*ch, ch)
    ch = Wc.shape[1]
    Wc_g, Wc_l, Wc_b = Wc[:ch], Wc[ch:2 * ch], Wc[2 * ch:]

    a_img = dot_h(Wg, Wc_g) + dot_h(Wl, Wc_l)         # (C_cnn, ch)
    a_bert = dot_h(Wb, Wc_b)                          # (Hb, ch)
    bias = dot_h(bg, Wc_g) + dot_h(bl, Wc_l) + dot_h(bb, Wc_b) + bc
    return {
        # bf16 MXU operands: native MXU rate on v6e/v7x, half the resident
        # weight VMEM; accumulation stays f32 via preferred_element_type.
        "a_img": a_img.astype(jnp.bfloat16),
        "a_bert": a_bert.astype(jnp.bfloat16),
        "bias": bias.astype(jnp.float32),
    }


# ----------------------------------------------------------------------------
# Generation-aware tiling / VMEM sizing
# ----------------------------------------------------------------------------
def _vmem_capacity_bytes():
    """Physical VMEM per TensorCore (64 MiB on v7x, 128 MiB on v5e/v6e)."""
    try:
        info = pltpu.get_tpu_info()
        cap = getattr(info, "vmem_capacity_bytes", None)
        if cap:
            return int(cap)
    except Exception:
        pass
    return 64 << 20  # conservative default (v7x)


def _choose_tiles(B, L, Hb, vmem_cap):
    """Pick (b_tile, B_pad, l_tile, L_pad).

    * b_tile: large enough to feed the MXU at finalize and amortize per-step
      overhead; split into >= 2 batch tiles when the batch allows it so v7x's
      two TensorCores both get work on the "parallel" axis.  Capped at 128.
    * l_tile: sized from the double-buffered bf16 hidden-state block budget
      (~1/2 of physical VMEM), padded to a sublane multiple.  Zero padding of
      the mask-weighted hidden states keeps the reduction exact.
    """
    L_ru = _round_up(L, 8)

    if B <= 16:
        b_tile = B
    else:
        b_tile = min(128, _round_up(_round_up(B, 16) // 2, 8))
    B_pad = _round_up(B, b_tile)

    budget_elems = (vmem_cap // 2) // (2 * 2)   # /2 buffers, /2 bytes (bf16)
    l_tile = budget_elems // max(b_tile * Hb, 1)
    l_tile = max(8, min(512, (l_tile // 8) * 8))
    if l_tile >= L_ru:
        l_tile = L_ru
        L_pad = L_ru
    else:
        L_pad = _round_up(L_ru, l_tile)
    return b_tile, B_pad, l_tile, L_pad


def _vmem_limit_bytes(b_tile, l_tile, C, Hb, ch, vmem_cap):
    """Scoped-VMEM request sized to the tiles (each input double-buffered),
    with headroom, kept under the chip's physical VMEM."""
    f32, bf16, lane = 4, 2, 128

    def pad_l(n):
        return _round_up(max(n, 1), lane)

    hs_blk = b_tile * l_tile * pad_l(Hb) * bf16
    pooled_blk = b_tile * pad_l(C) * bf16
    den_blk = b_tile * lane * f32
    out_blk = b_tile * pad_l(ch) * f32
    weights = (C * pad_l(ch) + Hb * pad_l(ch)) * bf16 + 8 * pad_l(ch) * f32
    scratch = b_tile * pad_l(Hb) * f32
    est = 2 * (hs_blk + pooled_blk + den_blk + out_blk + weights) + scratch
    est = int(est * 1.5) + (4 << 20)
    return int(min(max(est, 32 << 20), vmem_cap - (8 << 20)))


# ----------------------------------------------------------------------------
# Wrapper
# ----------------------------------------------------------------------------
@jax.jit
def shopee_img_text_net5_forward(feat_nchw, hidden_states, attention_mask, folded):
    """ShopeeImgTextNet5.forward head (labels=None path, eval mode).

    feat_nchw:      (B, C_cnn, H, W)   CNN backbone feature map (NCHW)
    hidden_states:  (4, B, L, H_bert)  stacked BERT hidden_states[-1..-4]
    attention_mask: (B, L)             int/bool mask
    folded:         dict from fold_params()
    returns concat_feat: (B, channel_size) float32
    """
    B, C, H, W = feat_nchw.shape
    _, _, L, Hb = hidden_states.shape
    ch = folded["a_img"].shape[1]
    mask = attention_mask.astype(jnp.float32)

    # ---- wrapper-side fusions (one XLA pass per big tensor) ----------------
    # Global and local heads both consume the same spatial mean.
    pooled = jnp.mean(feat_nchw.reshape(B, C, H * W), axis=-1)         # (B, C) f32
    pooled = pooled.astype(jnp.bfloat16)
    # Mask-weighted sum of the 4 hidden states fused with the bf16 cast:
    # 4x less HBM traffic in the kernel's streaming loop, no in-kernel mask.
    hs_masked = (jnp.sum(hidden_states, axis=0)
                 * mask[:, :, None]).astype(jnp.bfloat16)              # (B, L, Hb)
    # Token counts; clamp so an all-zero mask row yields 0 instead of NaN
    # (deliberate guard -- real attention masks always have >= 1 token).
    den = jnp.maximum(jnp.sum(mask, axis=-1, keepdims=True), 1.0)      # (B, 1)

    vmem_cap = _vmem_capacity_bytes()
    b_tile, B_pad, l_tile, L_pad = _choose_tiles(B, L, Hb, vmem_cap)

    # Zero padding is exact: hs_masked is already mask-weighted.
    if L_pad != L:
        hs_masked = jnp.pad(hs_masked, ((0, 0), (0, L_pad - L), (0, 0)))
    if B_pad != B:
        hs_masked = jnp.pad(hs_masked, ((0, B_pad - B), (0, 0), (0, 0)))
        pooled = jnp.pad(pooled, ((0, B_pad - B), (0, 0)))
        den = jnp.pad(den, ((0, B_pad - B), (0, 0)), constant_values=1.0)

    grid = (B_pad // b_tile, L_pad // l_tile)

    grid_spec = pltpu.PrefetchScalarGridSpec(
        num_scalar_prefetch=0,
        grid=grid,
        in_specs=[
            # hidden states: streamed over the sequence axis
            pl.BlockSpec((b_tile, l_tile, Hb), lambda bi, li: (bi, li, 0)),
            # per-batch small operands: constant over li -> fetched once
            pl.BlockSpec((b_tile, C), lambda bi, li: (bi, 0)),
            pl.BlockSpec((b_tile, 1), lambda bi, li: (bi, 0)),
            # folded weights: constant blocks
            pl.BlockSpec((C, ch), lambda bi, li: (0, 0)),
            pl.BlockSpec((Hb, ch), lambda bi, li: (0, 0)),
            pl.BlockSpec((1, ch), lambda bi, li: (0, 0)),
        ],
        out_specs=pl.BlockSpec((b_tile, ch), lambda bi, li: (bi, 0)),
        scratch_shapes=[pltpu.VMEM((b_tile, Hb), jnp.float32)],
    )

    out = pl.pallas_call(
        shopee_head_kernel,
        out_shape=jax.ShapeDtypeStruct((B_pad, ch), jnp.float32),
        grid_spec=grid_spec,
        compiler_params=pltpu.CompilerParams(
            dimension_semantics=("parallel", "arbitrary"),
            vmem_limit_bytes=_vmem_limit_bytes(b_tile, l_tile, C, Hb, ch, vmem_cap),
        ),
    )(hs_masked, pooled, den, folded["a_img"], folded["a_bert"], folded["bias"])

    return out[:B] if B_pad != B else out


# ----------------------------------------------------------------------------
# Pure-JAX f32 reference (original torch op order, eval mode) for validation
# ----------------------------------------------------------------------------
def reference_forward(feat_nchw, hidden_states, attention_mask, params):
    f32 = jnp.float32

    def linear_bn(x, p):
        W, b, gamma, beta, mean, var = p
        y = jnp.dot(x, W, precision=_HIGHEST) + b
        return (y - mean) * jax.lax.rsqrt(var + BN_EPS) * gamma + beta

    B, C = feat_nchw.shape[0], feat_nchw.shape[1]
    mask = attention_mask.astype(f32)
    pooled = jnp.mean(feat_nchw.reshape(B, C, -1), axis=-1)      # (B, C)
    g = linear_bn(pooled, params["global"])
    l = linear_bn(pooled, params["local"])
    hmean = jnp.mean(hidden_states, axis=0)                      # (B, L, Hb)
    num = jnp.sum(hmean * mask[:, :, None], axis=1)              # (B, Hb)
    den = jnp.sum(mask, axis=-1, keepdims=True)                  # (B, 1)
    bert = linear_bn(num / den, params["bert"])
    cat = jnp.concatenate([g, l, bert], axis=1)
    return linear_bn(cat, params["concat"])


# ----------------------------------------------------------------------------
if __name__ == "__main__":
    # Small shapes consistent with the module's forward.
    B, C_CNN, H, W = 2, 32, 4, 4       # cnn.num_features stand-in = 32
    L, H_BERT = 8, 32                  # seq len, bert hidden size stand-in
    CHANNEL_SIZE = 32                  # model_config.channel_size

    key = jax.random.PRNGKey(0)
    kf, kh, km, kp = jax.random.split(key, 4)

    feat = jax.random.normal(kf, (B, C_CNN, H, W), jnp.float32)
    hidden_states = jax.random.normal(kh, (4, B, L, H_BERT), jnp.float32)
    attention_mask = (jax.random.uniform(km, (B, L)) > 0.3).astype(jnp.int32)
    attention_mask = attention_mask.at[:, 0].set(1)   # guarantee non-empty mask

    params = init_params(kp, C_CNN, H_BERT, CHANNEL_SIZE)
    folded = fold_params(params)

    out = shopee_img_text_net5_forward(feat, hidden_states, attention_mask, folded)
    out = jax.block_until_ready(out)

    assert out.shape == (B, CHANNEL_SIZE) and out.dtype == jnp.float32
    assert bool(jnp.all(jnp.isfinite(out)))

    ref = reference_forward(feat, hidden_states, attention_mask, params)
    max_diff = float(jnp.max(jnp.abs(out - ref)))
    assert bool(jnp.allclose(out, ref, rtol=1e-2, atol=2e-2)), (
        f"max abs diff {max_diff}")

    print("KERNEL_OK")
</pallas_src>

<mosaic_0001>
module attributes {stable_mosaic.version = 11 : i64} {
  func.func @shopee_head_kernel(%arg0: i32, %arg1: i32, %arg2: memref<2x8x32xbf16, #tpu.memory_space<vmem>>, %arg3: memref<2x32xbf16, #tpu.memory_space<vmem>>, %arg4: memref<2x1xf32, #tpu.memory_space<vmem>>, %arg5: memref<32x32xbf16, #tpu.memory_space<vmem>>, %arg6: memref<32x32xbf16, #tpu.memory_space<vmem>>, %arg7: memref<1x32xf32, #tpu.memory_space<vmem>>, %arg8: memref<2x32xf32, #tpu.memory_space<vmem>>, %arg9: memref<2x32xf32, #tpu.memory_space<vmem>>) attributes {dimension_semantics = [#tpu.dimension_semantics<parallel>, #tpu.dimension_semantics<arbitrary>], iteration_bounds = array<i64: 1, 1>, scalar_prefetch = 0 : i64, scratch_operands = 1 : i64, tpu.core_type = #tpu.core_type<tc>, window_params = [{transform_indices = @transform_0, window_bounds = array<i64: 2, 8, 32>}, {transform_indices = @transform_1, window_bounds = array<i64: 2, 32>}, {transform_indices = @transform_2, window_bounds = array<i64: 2, 1>}, {pipeline_mode = #tpu.pipeline_mode<synchronous>, transform_indices = @transform_3, window_bounds = array<i64: 32, 32>}, {pipeline_mode = #tpu.pipeline_mode<synchronous>, transform_indices = @transform_4, window_bounds = array<i64: 32, 32>}, {pipeline_mode = #tpu.pipeline_mode<synchronous>, transform_indices = @transform_5, window_bounds = array<i64: 1, 32>}, {transform_indices = @transform_6, window_bounds = array<i64: 2, 32>}]} {
    %c0_i32 = arith.constant 0 : i32
    %0 = arith.cmpi eq, %arg1, %c0_i32 : i32
    %1 = arith.extui %0 : i1 to i32
    %c0_i32_0 = arith.constant 0 : i32
    %2 = arith.cmpi ne, %1, %c0_i32_0 : i32
    scf.if %2 {
      %cst_9 = arith.constant 0.000000e+00 : f32
      %12 = vector.broadcast %cst_9 : f32 to vector<2x32xf32>
      %c0_10 = arith.constant 0 : index
      %c0_11 = arith.constant 0 : index
      %13 = vector.load %arg9[%c0_10, %c0_11] : memref<2x32xf32, #tpu.memory_space<vmem>>, vector<2x32xf32>
      tpu.vector_store %arg9[%c0_10, %c0_11], %12 {strides = array<i32>} : memref<2x32xf32, #tpu.memory_space<vmem>>, vector<2x32xf32>,
    } else {
    }
    %c0 = arith.constant 0 : index
    %c0_1 = arith.constant 0 : index
    %3 = vector.load %arg9[%c0, %c0_1] : memref<2x32xf32, #tpu.memory_space<vmem>>, vector<2x32xf32>
    %c0_2 = arith.constant 0 : index
    %c0_3 = arith.constant 0 : index
    %c0_4 = arith.constant 0 : index
    %4 = vector.load %arg2[%c0_2, %c0_3, %c0_4] : memref<2x8x32xbf16, #tpu.memory_space<vmem>>, vector<2x8x32xbf16>
    %5 = arith.extf %4 : vector<2x8x32xbf16> to vector<2x8x32xf32>
    %cst = arith.constant dense<0.000000e+00> : vector<2x32xf32>
    %6 = vector.multi_reduction <add>, %5, %cst [1] : vector<2x8x32xf32> to vector<2x32xf32>
    %7 = arith.addf %3, %6 : vector<2x32xf32>
    %c0_5 = arith.constant 0 : index
    %c0_6 = arith.constant 0 : index
    %8 = vector.load %arg9[%c0_5, %c0_6] : memref<2x32xf32, #tpu.memory_space<vmem>>, vector<2x32xf32>
    tpu.vector_store %arg9[%c0_5, %c0_6], %7 {strides = array<i32>} : memref<2x32xf32, #tpu.memory_space<vmem>>, vector<2x32xf32>,
    %c0_i32_7 = arith.constant 0 : i32
    %9 = arith.cmpi eq, %arg1, %c0_i32_7 : i32
    %10 = arith.extui %9 : i1 to i32
    %c0_i32_8 = arith.constant 0 : i32
    %11 = arith.cmpi ne, %10, %c0_i32_8 : i32
    scf.if %11 {
      %c0_9 = arith.constant 0 : index
      %c0_10 = arith.constant 0 : index
      %12 = vector.load %arg9[%c0_9, %c0_10] : memref<2x32xf32, #tpu.memory_space<vmem>>, vector<2x32xf32>
      %c0_11 = arith.constant 0 : index
      %c0_12 = arith.constant 0 : index
      %13 = vector.load %arg4[%c0_11, %c0_12] : memref<2x1xf32, #tpu.memory_space<vmem>>, vector<2x1xf32>
      %cst_13 = arith.constant 2.500000e-01 : f32
      %14 = vector.broadcast %cst_13 : f32 to vector<2x1xf32>
      %15 = arith.divf %14, %13 : vector<2x1xf32>
      %16 = vector.broadcast %15 : vector<2x1xf32> to vector<2x32xf32>
      %17 = arith.mulf %12, %16 : vector<2x32xf32>
      %18 = arith.truncf %17 : vector<2x32xf32> to vector<2x32xbf16>
      %c0_14 = arith.constant 0 : index
      %c0_15 = arith.constant 0 : index
      %19 = vector.load %arg3[%c0_14, %c0_15] : memref<2x32xbf16, #tpu.memory_space<vmem>>, vector<2x32xbf16>
      %c0_16 = arith.constant 0 : index
      %c0_17 = arith.constant 0 : index
      %20 = vector.load %arg5[%c0_16, %c0_17] : memref<32x32xbf16, #tpu.memory_space<vmem>>, vector<32x32xbf16>
      %cst_18 = arith.constant dense<0.000000e+00> : vector<2x32xf32>
      %21 = tpu.matmul %19, %20, %cst_18 {dimension_numbers = #tpu.dot_dimension_numbers<[1], [0], [0], [1], [0, 0, 1, 1], [], []>} : vector<2x32xbf16>, vector<32x32xbf16>, vector<2x32xf32> -> vector<2x32xf32>
      %c0_19 = arith.constant 0 : index
      %c0_20 = arith.constant 0 : index
      %22 = vector.load %arg6[%c0_19, %c0_20] : memref<32x32xbf16, #tpu.memory_space<vmem>>, vector<32x32xbf16>
      %cst_21 = arith.constant dense<0.000000e+00> : vector<2x32xf32>
      %23 = tpu.matmul %18, %22, %cst_21 {dimension_numbers = #tpu.dot_dimension_numbers<[1], [0], [0], [1], [0, 0, 1, 1], [], []>} : vector<2x32xbf16>, vector<32x32xbf16>, vector<2x32xf32> -> vector<2x32xf32>
      %24 = arith.addf %21, %23 : vector<2x32xf32>
      %c0_22 = arith.constant 0 : index
      %c0_23 = arith.constant 0 : index
      %25 = vector.load %arg7[%c0_22, %c0_23] : memref<1x32xf32, #tpu.memory_space<vmem>>, vector<1x32xf32>
      %26 = vector.broadcast %25 : vector<1x32xf32> to vector<2x32xf32>
      %27 = arith.addf %24, %26 : vector<2x32xf32>
      %c0_24 = arith.constant 0 : index
      %c0_25 = arith.constant 0 : index
      %28 = vector.load %arg8[%c0_24, %c0_25] : memref<2x32xf32, #tpu.memory_space<vmem>>, vector<2x32xf32>
      tpu.vector_store %arg8[%c0_24, %c0_25], %27 {strides = array<i32>} : memref<2x32xf32, #tpu.memory_space<vmem>>, vector<2x32xf32>,
    } else {
    }
    return
  }
  func.func @transform_0(%arg0: i32, %arg1: i32) -> (i32, i32, i32) {
    %c0_i32 = arith.constant 0 : i32
    %c0_i32_0 = arith.constant 0 : i32
    return %arg0, %arg1, %c0_i32 : i32, i32, i32
  }
  func.func @transform_1(%arg0: i32, %arg1: i32) -> (i32, i32) {
    %c0_i32 = arith.constant 0 : i32
    %c0_i32_0 = arith.constant 0 : i32
    return %arg0, %c0_i32 : i32, i32
  }
  func.func @transform_2(%arg0: i32, %arg1: i32) -> (i32, i32) {
    %c0_i32 = arith.constant 0 : i32
    %c0_i32_0 = arith.constant 0 : i32
    return %arg0, %c0_i32 : i32, i32
  }
  func.func @transform_3(%arg0: i32, %arg1: i32) -> (i32, i32) {
    %c0_i32 = arith.constant 0 : i32
    %c0_i32_0 = arith.constant 0 : i32
    %c0_i32_1 = arith.constant 0 : i32
    return %c0_i32, %c0_i32_0 : i32, i32
  }
  func.func @transform_4(%arg0: i32, %arg1: i32) -> (i32, i32) {
    %c0_i32 = arith.constant 0 : i32
    %c0_i32_0 = arith.constant 0 : i32
    %c0_i32_1 = arith.constant 0 : i32
    return %c0_i32, %c0_i32_0 : i32, i32
  }
  func.func @transform_5(%arg0: i32, %arg1: i32) -> (i32, i32) {
    %c0_i32 = arith.constant 0 : i32
    %c0_i32_0 = arith.constant 0 : i32
    %c0_i32_1 = arith.constant 0 : i32
    return %c0_i32, %c0_i32_0 : i32, i32
  }
  func.func @transform_6(%arg0: i32, %arg1: i32) -> (i32, i32) {
    %c0_i32 = arith.constant 0 : i32
    %c0_i32_0 = arith.constant 0 : i32
    return %arg0, %c0_i32 : i32, i32
  }
}

</mosaic_0001>

<llo_original>
// kernel: shopee_img_text_net5_forward.1
$region0: #{shopee_img_text_net5_forward.1}
  #allocation0 [shape = 'u32[]', space=smem, size = 0x4, offset = 0x4, fixed_abs, tag = 'smem constant byte address 0x4 - core index']
  #allocation1 [shape = 'u32[144,128]{1,0:T(1,128)}', space=vmem, size = 0x12000, scoped, tag = 'internal scratch']
  #allocation2 [shape = 'f32[2,32]{1,0:T(2,128)}', space=vmem, size = 0x400, scoped, tag = 'scratch operand']
  %s0 = inlined_call_operand.vmem [shape: bf16[2,8,32], index: 0, kind: input, shape index: {}]
  %s1 = inlined_call_operand.vmem [shape: bf16[2,32], index: 1, kind: input, shape index: {}]
  %s2 = inlined_call_operand.vmem [shape: f32[2,1], index: 2, kind: input, shape index: {}]
  %s3 = inlined_call_operand.vmem [shape: bf16[32,32], index: 3, kind: input, shape index: {}]
  %s4 = inlined_call_operand.vmem [shape: bf16[32,32], index: 4, kind: input, shape index: {}]
  %s5 = inlined_call_operand.vmem [shape: f32[1,32], index: 5, kind: input, shape index: {}]
  %s6 = inlined_call_operand.hbm [shape: f32[2,32], index: 6, kind: output, shape index: {}]
  %s7 = sld [smem:[#allocation0]]
  $region42: #{shopee_img_text_net5_forward.1} parent=0
    _
  %s9 = ssub.s32 1, %s7
  %s10 = scalar_select 0, %s9, %s7
  $region1: #{shopee_img_text_net5_forward.1} parent=0
    #allocation3 [shape = 'u8[1024]{0}', space=vmem, size = 0x400, scoped, tag = 'output window, operand 0, single buffered']
    #allocation4 [shape = 's32[1]{0}', space=sflag, size = 0x4, scoped, tag = 'scoped memory for shopee_img_text_net5_forward.1']
    %11 = vsyncpa [#allocation4], 0
    // Predicated region
    $region2: #{shopee_img_text_net5_forward.1} parent=1 // pred_check
      _
    $region3: #{shopee_img_text_net5_forward.1} parent=1 // pred_check_branch
      %13 = sbr.rel (0) target = $region5
    $region4: #{shopee_img_text_net5_forward.1} parent=1 // pred_region
      _
    $region5: #{shopee_img_text_net5_forward.1} parent=1 // pred_fallthru
      _
    // Predicated region
    $region6: #{shopee_img_text_net5_forward.1} parent=1 // pred_check
      _
    $region7: #{shopee_img_text_net5_forward.1} parent=1 // pred_check_branch
      %15 = sbr.rel (0) target = $region9
    $region8: #{shopee_img_text_net5_forward.1} parent=1 // pred_region
      _
    $region9: #{shopee_img_text_net5_forward.1} parent=1 // pred_fallthru
      _
    // Predicated region
    $region10: #{shopee_img_text_net5_forward.1} parent=1 // pred_check
      _
    $region11: #{shopee_img_text_net5_forward.1} parent=1 // pred_check_branch
      %17 = sbr.rel (0) target = $region13
    $region12: #{shopee_img_text_net5_forward.1} parent=1 // pred_region
      _
    $region13: #{shopee_img_text_net5_forward.1} parent=1 // pred_fallthru
      _
    // Predicated region
    $region14: #{shopee_img_text_net5_forward.1} parent=1 // pred_check
      _
    $region15: #{shopee_img_text_net5_forward.1} parent=1 // pred_check_branch
      %19 = sbr.rel (0) target = $region17
    $region16: #{shopee_img_text_net5_forward.1} parent=1 // pred_region
      _
    $region17: #{shopee_img_text_net5_forward.1} parent=1 // pred_fallthru
      _
    // Predicated region
    $region18: #{shopee_img_text_net5_forward.1} parent=1 // pred_check
      _
    $region19: #{shopee_img_text_net5_forward.1} parent=1 // pred_check_branch
      %21 = sbr.rel (0) target = $region21
    $region20: #{shopee_img_text_net5_forward.1} parent=1 // pred_region
      _
    $region21: #{shopee_img_text_net5_forward.1} parent=1 // pred_fallthru
      _
    // Predicated region
    $region22: #{shopee_img_text_net5_forward.1} parent=1 // pred_check
      _
    $region23: #{shopee_img_text_net5_forward.1} parent=1 // pred_check_branch
      %23 = sbr.rel (0) target = $region25
    $region24: #{shopee_img_text_net5_forward.1} parent=1 // pred_region
      _
    $region25: #{shopee_img_text_net5_forward.1} parent=1 // pred_fallthru
      _
    %p25 = scmp.eq.s32.totalorder 0, 0
    // Predicated region
    $region26: #{shopee_img_text_net5_forward.1} parent=1 // pred_check
      %p26 = pneg %p25
    $region27: #{shopee_img_text_net5_forward.1} parent=1 // pred_check_branch
      %28 = sbr.rel (%p26) target = $region29
    $region28: #{shopee_img_text_net5_forward.1} parent=1 // pred_region
      %vm29 = vcmask 254976
      %30 = vst.msk [vmem:[#allocation2] sm:$0x3] %vm29, 0.0
    $region29: #{shopee_img_text_net5_forward.1} parent=1 // pred_fallthru
      _
    %v31 = vld [vmem:[#allocation2] sm:$0x3]
    %v32 = vld [vmem:[%s0] sm:$0xf]
    %v33 = vld [vmem:[%s0 + $0x4] sm:$0xf]
    %v34 = vunpack.c.l.bf16 %v32
    %v35 = vunpack.c.l.bf16 %v33
    %vm36 = vcmask 261120
    %v37 = vsel %vm36, %v34, 0.0
    %v38 = vrot.slane %v37, 4
    %v39 = vadd.f32 %v37, %v38
    %v40 = vrot.slane %v39, 2
    %v41 = vadd.f32 %v39, %v40
    %v42 = vrot.slane %v41, 1
    %v43 = vadd.f32 %v41, %v42
    %v44 = vsel %vm36, %v35, 0.0
    %v45 = vrot.slane %v44, 4
    %v46 = vadd.f32 %v44, %v45
    %v47 = vrot.slane %v46, 2
    %v48 = vadd.f32 %v46, %v47
    %v49 = vrot.slane %v48, 1
    %v50 = vadd.f32 %v48, %v49
    %vm53 = vcmask 1041409
    %v54 = vsel %vm53, %v50, %v43
    %v56 = vadd.f32 %v31, %v54
    %vm57 = vcmask 254976
    %58 = vst.msk [vmem:[#allocation2] sm:$0x3] %vm57, %v56
    // Predicated region
    $region30: #{shopee_img_text_net5_forward.1} parent=1 // pred_check
      %p59 = pneg %p25
    $region31: #{shopee_img_text_net5_forward.1} parent=1 // pred_check_branch
      %61 = sbr.rel (%p59) target = $region33
    $region32: #{shopee_img_text_net5_forward.1} parent=1 // pred_region
      %v62 = vld [vmem:[#allocation2] sm:$0x3]
      %v63 = vld [vmem:[%s2] sm:$0x3]
      %v64 = vrcp.pop %v63
      %v65 = vmul.f32 0.25, %v64
      %67 = vset.pattern.permute.xlu0 0
      %68 = vperm.xlu0 %67, %v65
      %v69 = vpop.permute.xlu0 %68
      %v71 = vmul.f32 %v62, %v69
      %v72 = vpack.c.bf16 %v71, %v71
      %v73 = vld [vmem:[%s1] sm:$0x1]
      %v74 = vld [vmem:[%s3] sm:$0xf]
      %v75 = vld [vmem:[%s3 + $0x4] sm:$0xf]
      %v76 = vld [vmem:[%s3 + $0x8] sm:$0xf]
      %v77 = vld [vmem:[%s3 + $0xc] sm:$0xf]
      %v78 = vld [vmem:[%s4] sm:$0xf]
      %v79 = vld [vmem:[%s4 + $0x4] sm:$0xf]
      %v80 = vld [vmem:[%s4 + $0x8] sm:$0xf]
      %v81 = vld [vmem:[%s4 + $0xc] sm:$0xf]
      %v86 = vunpack.c.l.b16 %v78
      %v87 = vunpack.c.l.b16 %v79
      %v88 = vunpack.c.l.b16 %v80
      %v89 = vunpack.c.l.b16 %v81
      %v90 = vpack.c.b16 %v87, %v86
      %v91 = vpack.c.b16 %v89, %v88
      %v95 = vsel %vm36, %v72, 0
      %97 = vmatprep.subr.bf16.mxu0 0
      %98 = vmatpush1.bf16.msra.mxu0 %v90
      %99 = vmatprep.subr.bf16.mxu0 0
      %100 = vmatpush1.bf16.msra.mxu0 %v91
      %101 = vmatprep.subr.bf16.mxu0 0
      %102 = vmatpush1.bf16.msra.mxu0 0
      %103 = vmatprep.subr.bf16.mxu0 0
      %104 = vmatpush1.bf16.msra.mxu0 0
      %105 = vmatprep.subr.bf16.mxu0 0
      %106 = vmatpush1.bf16.msra.mxu0 0
      %107 = vmatprep.subr.bf16.mxu0 0
      %108 = vmatpush1.bf16.msra.mxu0 0
      %109 = vmatprep.subr.bf16.mxu0 0
      %110 = vmatpush1.bf16.msra.mxu0 0
      %111 = vmatprep.subr.bf16.mxu0 0
      %112 = vmatpush1.bf16.msra.mxu0 0
      %113 = vmatprep.subr.bf16.mxu0 0
      %114 = vmatpush1.bf16.msra.mxu0 0
      %115 = vmatprep.subr.bf16.mxu0 0
      %116 = vmatpush1.bf16.msra.mxu0 0
      %117 = vmatprep.subr.bf16.mxu0 0
      %118 = vmatpush1.bf16.msra.mxu0 0
      %119 = vmatprep.subr.bf16.mxu0 0
      %120 = vmatpush1.bf16.msra.mxu0 0
      %121 = vmatprep.subr.bf16.mxu0 0
      %122 = vmatpush1.bf16.msra.mxu0 0
      %123 = vmatprep.subr.bf16.mxu0 0
      %124 = vmatpush1.bf16.msra.mxu0 0
      %125 = vmatprep.subr.bf16.mxu0 0
      %126 = vmatpush1.bf16.msra.mxu0 0
      %127 = vmatprep.subr.bf16.mxu0 0
      %128 = vmatpush1.bf16.msra.mxu0 0
      %129 = vmatprep.mubr.bf16.mxu0 0
      %130 = vmatmul.mubr.bf16.gmra.mrb[0].mxu0 %v95
      %v131 = vpop.f32.mrb[0].mxu0
      %v132 = vadd.f32 0.0, %v131
      %v133 = vpop.f32.mrb[0].mxu0
      %v134 = vpop.f32.mrb[0].mxu0
      %v135 = vpop.f32.mrb[0].mxu0
      %136 = vdwg.mxu0
      %v141 = vunpack.c.l.b16 %v74
      %v142 = vunpack.c.l.b16 %v75
      %v143 = vunpack.c.l.b16 %v76
      %v144 = vunpack.c.l.b16 %v77
      %v145 = vpack.c.b16 %v142, %v141
      %v146 = vpack.c.b16 %v144, %v143
      %v150 = vsel %vm36, %v73, 0
      %152 = vmatprep.subr.bf16.mxu0 0
      %153 = vmatpush1.bf16.msra.mxu0 %v145
      %154 = vmatprep.subr.bf16.mxu0 0
      %155 = vmatpush1.bf16.msra.mxu0 %v146
      %156 = vmatprep.subr.bf16.mxu0 0
      %157 = vmatpush1.bf16.msra.mxu0 0
      %158 = vmatprep.subr.bf16.mxu0 0
      %159 = vmatpush1.bf16.msra.mxu0 0
      %160 = vmatprep.subr.bf16.mxu0 0
      %161 = vmatpush1.bf16.msra.mxu0 0
      %162 = vmatprep.subr.bf16.mxu0 0
      %163 = vmatpush1.bf16.msra.mxu0 0
      %164 = vmatprep.subr.bf16.mxu0 0
      %165 = vmatpush1.bf16.msra.mxu0 0
      %166 = vmatprep.subr.bf16.mxu0 0
      %167 = vmatpush1.bf16.msra.mxu0 0
      %168 = vmatprep.subr.bf16.mxu0 0
      %169 = vmatpush1.bf16.msra.mxu0 0
      %170 = vmatprep.subr.bf16.mxu0 0
      %171 = vmatpush1.bf16.msra.mxu0 0
      %172 = vmatprep.subr.bf16.mxu0 0
      %173 = vmatpush1.bf16.msra.mxu0 0
      %174 = vmatprep.subr.bf16.mxu0 0
      %175 = vmatpush1.bf16.msra.mxu0 0
      %176 = vmatprep.subr.bf16.mxu0 0
      %177 = vmatpush1.bf16.msra.mxu0 0
      %178 = vmatprep.subr.bf16.mxu0 0
      %179 = vmatpush1.bf16.msra.mxu0 0
      %180 = vmatprep.subr.bf16.mxu0 0
      %181 = vmatpush1.bf16.msra.mxu0 0
      %182 = vmatprep.subr.bf16.mxu0 0
      %183 = vmatpush1.bf16.msra.mxu0 0
      %184 = vmatprep.mubr.bf16.mxu0 0
      %185 = vmatmul.mubr.bf16.gmra.mrb[0].mxu0 %v150
      %v186 = vpop.f32.mrb[0].mxu0
      %v187 = vadd.f32 %v132, %v186
      %v188 = vpop.f32.mrb[0].mxu0
      %v189 = vpop.f32.mrb[0].mxu0
      %v190 = vpop.f32.mrb[0].mxu0
      %191 = vdwg.mxu0
      %v192 = vld [vmem:[%s5] sm:$0x1]
      %v194 = vlaneseq
      %v195 = vshrl.u32 %v194, 7
      %v196 = vsub.s32 0, %v195
      %v197 = vrot.slane %v192, %v196
      %v199 = vadd.f32 %v187, %v197
      %200 = vst.msk [vmem:[#allocation3] sm:$0x3] %vm57, %v199
    $region33: #{shopee_img_text_net5_forward.1} parent=1 // pred_fallthru
      _
    // Predicated region
    $region34: #{shopee_img_text_net5_forward.1} parent=1 // pred_check
      _
    $region35: #{shopee_img_text_net5_forward.1} parent=1 // pred_check_branch
      %202 = sbr.rel (0) target = $region37
    $region36: #{shopee_img_text_net5_forward.1} parent=1 // pred_region
      %s204 = ssub.s32 32, 32
      %205 = vsyncadd [#allocation4], %s204
      %s207 = sshll.u32 [#allocation3], 4
      %s208 = int_to_ptr.vmem [resolvable:$true] %s207
      %210 = dma.vmem_to_hbm [thread:$0]  %s208, 32, %s6, [#allocation4]
    $region37: #{shopee_img_text_net5_forward.1} parent=1 // pred_fallthru
      _
    // Predicated region
    $region38: #{shopee_img_text_net5_forward.1} parent=1 // pred_check
      _
    $region39: #{shopee_img_text_net5_forward.1} parent=1 // pred_check_branch
      %212 = sbr.rel (0) target = $region41
    $region40: #{shopee_img_text_net5_forward.1} parent=1 // pred_region
      %213 = dma.done [#allocation4], 32
    $region41: #{shopee_img_text_net5_forward.1} parent=1 // pred_fallthru
      _
    %214 = vsyncpa [#allocation4], 1

</llo_original>
